<compile_context>
chip_gen: v5e
topology: v5e:2x2
jax: 0.10.0
libtpu: 0.0.40
codegen_flags: <defaults>
</compile_context>

<pallas_src>
import functools

import jax
import jax.numpy as jnp
from jax.experimental import pallas as pl
from jax.experimental.pallas import tpu as pltpu


# ---------------------------------------------------------------------------
# Kernel
# ---------------------------------------------------------------------------
def vae_kernel(x_ref, eps_ref, w_in_ref, w_h_ref, b_ref, xhat_ref, ml_ref,
               *, xp, hp, lp, mxu_dtype):
    """One batch tile of the full VAE forward pass.

    x_ref    : (TB, xp)                 f32   input features (zero padded)
    eps_ref  : (TB, lp)                 f32   N(0,1) noise    (zero padded)
    w_in_ref : (xp + lp, hp)            bf16  rows [0:xp]=enc.FC1^T, [xp:xp+lp]=dec.FC1^T
    w_h_ref  : (hp, 2*hp + 2*lp + xp)   bf16  lanes: enc.FC2 | (FC_mu|FC_var) | dec.FC2 | dec.FC_out
    b_ref    : (8, BL)                  f32   one bias per row (zero padded)
    xhat_ref : (TB, xp)                 f32   reconstruction
    ml_ref   : (TB, 2*lp)               f32   [mean | log_var] slab
    """
    dot = functools.partial(jnp.dot, preferred_element_type=jnp.float32)
    cast = lambda v: v.astype(mxu_dtype)  # bf16 into the MXU, f32 accumulate

    x = x_ref[...]
    eps = eps_ref[...]

    # Static, tile-aligned slices into the packed weight slabs (128-multiple offsets).
    ew1 = w_in_ref[0:xp, :]                                # (xp, hp)
    dw1 = w_in_ref[xp:xp + lp, :]                          # (lp, hp)
    ew2 = w_h_ref[:, 0:hp]                                 # (hp, hp)
    wml = w_h_ref[:, hp:hp + 2 * lp]                       # (hp, 2*lp)  fused mu|log_var head
    dw2 = w_h_ref[:, hp + 2 * lp:2 * hp + 2 * lp]          # (hp, hp)
    dwo = w_h_ref[:, 2 * hp + 2 * lp:2 * hp + 2 * lp + xp] # (hp, xp)

    eb1 = b_ref[0:1, 0:hp]
    eb2 = b_ref[1:2, 0:hp]
    bml = b_ref[2:3, 0:2 * lp]
    db1 = b_ref[3:4, 0:hp]
    db2 = b_ref[4:5, 0:hp]
    dbo = b_ref[5:6, 0:xp]

    # ---- Encoder ----
    h = jnp.maximum(dot(cast(x), ew1) + eb1, 0.0)
    h = jnp.maximum(dot(cast(h), ew2) + eb2, 0.0)
    ml = dot(cast(h), wml) + bml                           # (TB, 2*lp): mean | log_var
    mean = ml[:, 0:lp]
    log_var = ml[:, lp:2 * lp]

    # ---- Reparameterization: z = mean + exp(0.5 * log_var) * eps  (f32 VPU/EUP) ----
    z = mean + jnp.exp(0.5 * log_var) * eps

    # ---- Decoder ----
    d = jnp.maximum(dot(cast(z), dw1) + db1, 0.0)
    d = jnp.maximum(dot(cast(d), dw2) + db2, 0.0)
    xhat_ref[...] = dot(cast(d), dwo) + dbo
    ml_ref[...] = ml


# ---------------------------------------------------------------------------
# Packing / padding helpers
# ---------------------------------------------------------------------------
def _round_up(n, m):
    return ((n + m - 1) // m) * m


def _pad2(a, rows, cols):
    r, c = a.shape
    return jnp.pad(a, ((0, rows - r), (0, cols - c)))


def _pad1(v, n):
    return jnp.pad(v, (0, n - v.shape[0]))


def pack_params(params, x_dim, hidden_dim, latent_dim, weight_dtype):
    """Pads every feature dim to a lane multiple and packs 14 tensors into 3 slabs."""
    xp = _round_up(x_dim, 128)
    hp = _round_up(hidden_dim, 128)
    lp = _round_up(latent_dim, 128)
    BL = max(hp, 2 * lp, xp)

    # Input-side weights (both map *something* -> hidden): row-stacked.
    w_in = jnp.concatenate(
        [_pad2(params["ew1"], xp, hp), _pad2(params["dw1"], lp, hp)], axis=0
    ).astype(weight_dtype)                                            # (xp+lp, hp)

    # Hidden-side weights (all consume the hidden dim): lane-concatenated.
    wml = jnp.concatenate(
        [_pad2(params["wmu"], hp, lp), _pad2(params["wlv"], hp, lp)], axis=1
    )                                                                 # fused mu|log_var head
    w_h = jnp.concatenate(
        [_pad2(params["ew2"], hp, hp), wml,
         _pad2(params["dw2"], hp, hp), _pad2(params["dwo"], hp, xp)], axis=1
    ).astype(weight_dtype)                                            # (hp, 2*hp+2*lp+xp)

    # All biases in one (8, BL) f32 slab (one bias per row; padded lanes are 0 so the
    # padded output lanes of every layer stay exactly 0).
    b_ml = jnp.concatenate([_pad1(params["bmu"], lp), _pad1(params["blv"], lp)])
    bias = jnp.stack([
        _pad1(params["eb1"], BL), _pad1(params["eb2"], BL), _pad1(b_ml, BL),
        _pad1(params["db1"], BL), _pad1(params["db2"], BL), _pad1(params["dbo"], BL),
        jnp.zeros((BL,), jnp.float32), jnp.zeros((BL,), jnp.float32),
    ]).astype(jnp.float32)                                            # (8, BL)

    return w_in, w_h, bias, (xp, hp, lp, BL)


# ---------------------------------------------------------------------------
# Wrapper
# ---------------------------------------------------------------------------
def vae_forward(x, eps, params, *, weight_dtype=jnp.bfloat16, max_batch_tile=256):
    """Full VAE forward in one Pallas kernel. Returns (x_hat, mean, log_var)."""
    B, x_dim = x.shape
    latent_dim = eps.shape[1]
    hidden_dim = params["ew1"].shape[1]

    w_in, w_h, bias, (xp, hp, lp, BL) = pack_params(
        params, x_dim, hidden_dim, latent_dim, weight_dtype)

    # Batch tiling: one "parallel" grid axis (shards across both TCs on v7x for big B);
    # weights use a constant index_map so they stay resident in VMEM across batch tiles.
    TB = min(_round_up(B, 8), max_batch_tile)
    Bp = _round_up(B, TB)
    x_p = _pad2(x.astype(jnp.float32), Bp, xp)
    eps_p = _pad2(eps.astype(jnp.float32), Bp, lp)

    kernel = functools.partial(vae_kernel, xp=xp, hp=hp, lp=lp, mxu_dtype=weight_dtype)

    xhat_p, ml_p = pl.pallas_call(
        kernel,
        out_shape=(
            jax.ShapeDtypeStruct((Bp, xp), jnp.float32),       # x_hat (padded)
            jax.ShapeDtypeStruct((Bp, 2 * lp), jnp.float32),   # [mean | log_var] slab
        ),
        grid=(Bp // TB,),
        in_specs=[
            pl.BlockSpec((TB, xp), lambda i: (i, 0)),                          # x
            pl.BlockSpec((TB, lp), lambda i: (i, 0)),                          # eps
            pl.BlockSpec((xp + lp, hp), lambda i: (0, 0)),                     # w_in (resident)
            pl.BlockSpec((hp, 2 * hp + 2 * lp + xp), lambda i: (0, 0)),        # w_h  (resident)
            pl.BlockSpec((8, BL), lambda i: (0, 0)),                           # biases (resident)
        ],
        out_specs=(
            pl.BlockSpec((TB, xp), lambda i: (i, 0)),
            pl.BlockSpec((TB, 2 * lp), lambda i: (i, 0)),
        ),
        compiler_params=pltpu.CompilerParams(dimension_semantics=("parallel",)),
    )(x_p, eps_p, w_in, w_h, bias)

    x_hat = xhat_p[:B, :x_dim]
    mean = ml_p[:B, :latent_dim]
    log_var = ml_p[:B, lp:lp + latent_dim]
    return x_hat, mean, log_var


# ---------------------------------------------------------------------------
# Params / reference
# ---------------------------------------------------------------------------
def init_params(key, x_dim, hidden_dim, latent_dim):
    """nn.Linear-style init: uniform(-1/sqrt(fan_in), 1/sqrt(fan_in)); W stored as (in, out)."""
    def linear(k, fan_in, fan_out):
        kw, kb = jax.random.split(k)
        bound = 1.0 / jnp.sqrt(float(fan_in))
        w = jax.random.uniform(kw, (fan_in, fan_out), jnp.float32, -bound, bound)
        b = jax.random.uniform(kb, (fan_out,), jnp.float32, -bound, bound)
        return w, b

    keys = jax.random.split(key, 7)
    ew1, eb1 = linear(keys[0], x_dim, hidden_dim)
    ew2, eb2 = linear(keys[1], hidden_dim, hidden_dim)
    wmu, bmu = linear(keys[2], hidden_dim, latent_dim)
    wlv, blv = linear(keys[3], hidden_dim, latent_dim)
    dw1, db1 = linear(keys[4], latent_dim, hidden_dim)
    dw2, db2 = linear(keys[5], hidden_dim, hidden_dim)
    dwo, dbo = linear(keys[6], hidden_dim, x_dim)
    return dict(ew1=ew1, eb1=eb1, ew2=ew2, eb2=eb2, wmu=wmu, bmu=bmu,
                wlv=wlv, blv=blv, dw1=dw1, db1=db1, dw2=dw2, db2=db2,
                dwo=dwo, dbo=dbo)


def vae_forward_ref(x, eps, p):
    """Pure-JAX f32 reference of the same forward pass."""
    h = jax.nn.relu(x @ p["ew1"] + p["eb1"])
    h = jax.nn.relu(h @ p["ew2"] + p["eb2"])
    mean = h @ p["wmu"] + p["bmu"]
    log_var = h @ p["wlv"] + p["blv"]
    z = mean + jnp.exp(0.5 * log_var) * eps
    d = jax.nn.relu(z @ p["dw1"] + p["db1"])
    d = jax.nn.relu(d @ p["dw2"] + p["db2"])
    x_hat = d @ p["dwo"] + p["dbo"]
    return x_hat, mean, log_var


# ---------------------------------------------------------------------------
if __name__ == "__main__":
    # Small shapes consistent with the module: hidden_dim=10, latent_dim=6.
    batch = 8
    x_dim = 16
    hidden_dim = 10
    latent_dim = 6

    key = jax.random.PRNGKey(0)
    k_params, k_x, k_eps = jax.random.split(key, 3)

    params = init_params(k_params, x_dim, hidden_dim, latent_dim)
    x = jax.random.normal(k_x, (batch, x_dim), jnp.float32)
    # torch.randn_like(var) equivalent: deterministic standard-normal noise passed in.
    eps = jax.random.normal(k_eps, (batch, latent_dim), jnp.float32)

    ref = vae_forward_ref(x, eps, params)

    # Exact-math path (f32 weights on the MXU) — tight check.
    out_f32 = vae_forward(x, eps, params, weight_dtype=jnp.float32)
    jax.block_until_ready(out_f32)
    for got, want in zip(out_f32, ref):
        assert jnp.allclose(got, want, atol=1e-5), "f32 kernel mismatch"

    # Perf path (bf16 weights/activations into the MXU, f32 accumulate) — loose check.
    out_bf16 = vae_forward(x, eps, params, weight_dtype=jnp.bfloat16)
    jax.block_until_ready(out_bf16)
    for got, want in zip(out_bf16, ref):
        assert jnp.allclose(got, want, rtol=5e-2, atol=5e-2), "bf16 kernel mismatch"

    print("KERNEL_OK")
</pallas_src>

<mosaic_0001>
module attributes {stable_mosaic.version = 11 : i64} {
  func.func @vae_kernel(%arg0: i32, %arg1: memref<8x128xf32, #tpu.memory_space<vmem>>, %arg2: memref<8x128xf32, #tpu.memory_space<vmem>>, %arg3: memref<256x128xf32, #tpu.memory_space<vmem>>, %arg4: memref<128x640xf32, #tpu.memory_space<vmem>>, %arg5: memref<8x256xf32, #tpu.memory_space<vmem>>, %arg6: memref<8x128xf32, #tpu.memory_space<vmem>>, %arg7: memref<8x256xf32, #tpu.memory_space<vmem>>) attributes {dimension_semantics = [#tpu.dimension_semantics<parallel>], iteration_bounds = array<i64: 1>, scalar_prefetch = 0 : i64, scratch_operands = 0 : i64, tpu.core_type = #tpu.core_type<tc>, window_params = [{transform_indices = @transform_0, window_bounds = array<i64: 8, 128>}, {transform_indices = @transform_1, window_bounds = array<i64: 8, 128>}, {pipeline_mode = #tpu.pipeline_mode<synchronous>, transform_indices = @transform_2, window_bounds = array<i64: 256, 128>}, {pipeline_mode = #tpu.pipeline_mode<synchronous>, transform_indices = @transform_3, window_bounds = array<i64: 128, 640>}, {pipeline_mode = #tpu.pipeline_mode<synchronous>, transform_indices = @transform_4, window_bounds = array<i64: 8, 256>}, {transform_indices = @transform_5, window_bounds = array<i64: 8, 128>}, {transform_indices = @transform_6, window_bounds = array<i64: 8, 256>}]} {
    %c0 = arith.constant 0 : index
    %c0_0 = arith.constant 0 : index
    %0 = vector.load %arg1[%c0, %c0_0] : memref<8x128xf32, #tpu.memory_space<vmem>>, vector<8x128xf32>
    %c0_1 = arith.constant 0 : index
    %c0_2 = arith.constant 0 : index
    %1 = vector.load %arg2[%c0_1, %c0_2] : memref<8x128xf32, #tpu.memory_space<vmem>>, vector<8x128xf32>
    %c0_3 = arith.constant 0 : index
    %c0_4 = arith.constant 0 : index
    %2 = vector.load %arg3[%c0_3, %c0_4] : memref<256x128xf32, #tpu.memory_space<vmem>>, vector<128x128xf32>
    %c128 = arith.constant 128 : index
    %c0_5 = arith.constant 0 : index
    %3 = vector.load %arg3[%c128, %c0_5] : memref<256x128xf32, #tpu.memory_space<vmem>>, vector<128x128xf32>
    %c0_6 = arith.constant 0 : index
    %c0_7 = arith.constant 0 : index
    %4 = vector.load %arg4[%c0_6, %c0_7] : memref<128x640xf32, #tpu.memory_space<vmem>>, vector<128x128xf32>
    %c0_8 = arith.constant 0 : index
    %c128_9 = arith.constant 128 : index
    %5 = vector.load %arg4[%c0_8, %c128_9] : memref<128x640xf32, #tpu.memory_space<vmem>>, vector<128x256xf32>
    %c0_10 = arith.constant 0 : index
    %c384 = arith.constant 384 : index
    %6 = vector.load %arg4[%c0_10, %c384] : memref<128x640xf32, #tpu.memory_space<vmem>>, vector<128x128xf32>
    %c0_11 = arith.constant 0 : index
    %c512 = arith.constant 512 : index
    %7 = vector.load %arg4[%c0_11, %c512] : memref<128x640xf32, #tpu.memory_space<vmem>>, vector<128x128xf32>
    %c0_12 = arith.constant 0 : index
    %c0_13 = arith.constant 0 : index
    %8 = vector.load %arg5[%c0_12, %c0_13] : memref<8x256xf32, #tpu.memory_space<vmem>>, vector<1x128xf32>
    %c1 = arith.constant 1 : index
    %c0_14 = arith.constant 0 : index
    %9 = vector.load %arg5[%c1, %c0_14] : memref<8x256xf32, #tpu.memory_space<vmem>>, vector<1x128xf32>
    %c2 = arith.constant 2 : index
    %c0_15 = arith.constant 0 : index
    %10 = vector.load %arg5[%c2, %c0_15] : memref<8x256xf32, #tpu.memory_space<vmem>>, vector<1x256xf32>
    %c3 = arith.constant 3 : index
    %c0_16 = arith.constant 0 : index
    %11 = vector.load %arg5[%c3, %c0_16] : memref<8x256xf32, #tpu.memory_space<vmem>>, vector<1x128xf32>
    %c4 = arith.constant 4 : index
    %c0_17 = arith.constant 0 : index
    %12 = vector.load %arg5[%c4, %c0_17] : memref<8x256xf32, #tpu.memory_space<vmem>>, vector<1x128xf32>
    %c5 = arith.constant 5 : index
    %c0_18 = arith.constant 0 : index
    %13 = vector.load %arg5[%c5, %c0_18] : memref<8x256xf32, #tpu.memory_space<vmem>>, vector<1x128xf32>
    %cst = arith.constant dense<0.000000e+00> : vector<8x128xf32>
    %14 = tpu.matmul %0, %2, %cst {dimension_numbers = #tpu.dot_dimension_numbers<[1], [0], [0], [1], [0, 0, 1, 1], [], []>} : vector<8x128xf32>, vector<128x128xf32>, vector<8x128xf32> -> vector<8x128xf32>
    %15 = vector.broadcast %8 : vector<1x128xf32> to vector<8x128xf32>
    %16 = arith.addf %14, %15 : vector<8x128xf32>
    %cst_19 = arith.constant 0.000000e+00 : f32
    %17 = vector.broadcast %cst_19 : f32 to vector<8x128xf32>
    %18 = arith.maximumf %16, %17 : vector<8x128xf32>
    %cst_20 = arith.constant dense<0.000000e+00> : vector<8x128xf32>
    %19 = tpu.matmul %18, %4, %cst_20 {dimension_numbers = #tpu.dot_dimension_numbers<[1], [0], [0], [1], [0, 0, 1, 1], [], []>} : vector<8x128xf32>, vector<128x128xf32>, vector<8x128xf32> -> vector<8x128xf32>
    %20 = vector.broadcast %9 : vector<1x128xf32> to vector<8x128xf32>
    %21 = arith.addf %19, %20 : vector<8x128xf32>
    %cst_21 = arith.constant 0.000000e+00 : f32
    %22 = vector.broadcast %cst_21 : f32 to vector<8x128xf32>
    %23 = arith.maximumf %21, %22 : vector<8x128xf32>
    %cst_22 = arith.constant dense<0.000000e+00> : vector<8x256xf32>
    %24 = tpu.matmul %23, %5, %cst_22 {dimension_numbers = #tpu.dot_dimension_numbers<[1], [0], [0], [1], [0, 0, 1, 1], [], []>} : vector<8x128xf32>, vector<128x256xf32>, vector<8x256xf32> -> vector<8x256xf32>
    %25 = vector.broadcast %10 : vector<1x256xf32> to vector<8x256xf32>
    %26 = arith.addf %24, %25 : vector<8x256xf32>
    %27 = vector.extract_strided_slice %26 {offsets = [0, 0], sizes = [8, 128], strides = [1, 1]} : vector<8x256xf32> to vector<8x128xf32>
    %28 = vector.extract_strided_slice %26 {offsets = [0, 128], sizes = [8, 128], strides = [1, 1]} : vector<8x256xf32> to vector<8x128xf32>
    %cst_23 = arith.constant 5.000000e-01 : f32
    %29 = vector.broadcast %cst_23 : f32 to vector<8x128xf32>
    %30 = arith.mulf %29, %28 : vector<8x128xf32>
    %31 = math.exp %30 : vector<8x128xf32>
    %32 = arith.mulf %31, %1 : vector<8x128xf32>
    %33 = arith.addf %27, %32 : vector<8x128xf32>
    %cst_24 = arith.constant dense<0.000000e+00> : vector<8x128xf32>
    %34 = tpu.matmul %33, %3, %cst_24 {dimension_numbers = #tpu.dot_dimension_numbers<[1], [0], [0], [1], [0, 0, 1, 1], [], []>} : vector<8x128xf32>, vector<128x128xf32>, vector<8x128xf32> -> vector<8x128xf32>
    %35 = vector.broadcast %11 : vector<1x128xf32> to vector<8x128xf32>
    %36 = arith.addf %34, %35 : vector<8x128xf32>
    %cst_25 = arith.constant 0.000000e+00 : f32
    %37 = vector.broadcast %cst_25 : f32 to vector<8x128xf32>
    %38 = arith.maximumf %36, %37 : vector<8x128xf32>
    %cst_26 = arith.constant dense<0.000000e+00> : vector<8x128xf32>
    %39 = tpu.matmul %38, %6, %cst_26 {dimension_numbers = #tpu.dot_dimension_numbers<[1], [0], [0], [1], [0, 0, 1, 1], [], []>} : vector<8x128xf32>, vector<128x128xf32>, vector<8x128xf32> -> vector<8x128xf32>
    %40 = vector.broadcast %12 : vector<1x128xf32> to vector<8x128xf32>
    %41 = arith.addf %39, %40 : vector<8x128xf32>
    %cst_27 = arith.constant 0.000000e+00 : f32
    %42 = vector.broadcast %cst_27 : f32 to vector<8x128xf32>
    %43 = arith.maximumf %41, %42 : vector<8x128xf32>
    %cst_28 = arith.constant dense<0.000000e+00> : vector<8x128xf32>
    %44 = tpu.matmul %43, %7, %cst_28 {dimension_numbers = #tpu.dot_dimension_numbers<[1], [0], [0], [1], [0, 0, 1, 1], [], []>} : vector<8x128xf32>, vector<128x128xf32>, vector<8x128xf32> -> vector<8x128xf32>
    %45 = vector.broadcast %13 : vector<1x128xf32> to vector<8x128xf32>
    %46 = arith.addf %44, %45 : vector<8x128xf32>
    %c0_29 = arith.constant 0 : index
    %c0_30 = arith.constant 0 : index
    %47 = vector.load %arg6[%c0_29, %c0_30] : memref<8x128xf32, #tpu.memory_space<vmem>>, vector<8x128xf32>
    tpu.vector_store %arg6[%c0_29, %c0_30], %46 {strides = array<i32>} : memref<8x128xf32, #tpu.memory_space<vmem>>, vector<8x128xf32>,
    %c0_31 = arith.constant 0 : index
    %c0_32 = arith.constant 0 : index
    %48 = vector.load %arg7[%c0_31, %c0_32] : memref<8x256xf32, #tpu.memory_space<vmem>>, vector<8x256xf32>
    tpu.vector_store %arg7[%c0_31, %c0_32], %26 {strides = array<i32>} : memref<8x256xf32, #tpu.memory_space<vmem>>, vector<8x256xf32>,
    return
  }
  func.func @transform_0(%arg0: i32) -> (i32, i32) {
    %c0_i32 = arith.constant 0 : i32
    %c0_i32_0 = arith.constant 0 : i32
    return %arg0, %c0_i32 : i32, i32
  }
  func.func @transform_1(%arg0: i32) -> (i32, i32) {
    %c0_i32 = arith.constant 0 : i32
    %c0_i32_0 = arith.constant 0 : i32
    return %arg0, %c0_i32 : i32, i32
  }
  func.func @transform_2(%arg0: i32) -> (i32, i32) {
    %c0_i32 = arith.constant 0 : i32
    %c0_i32_0 = arith.constant 0 : i32
    %c0_i32_1 = arith.constant 0 : i32
    return %c0_i32, %c0_i32_0 : i32, i32
  }
  func.func @transform_3(%arg0: i32) -> (i32, i32) {
    %c0_i32 = arith.constant 0 : i32
    %c0_i32_0 = arith.constant 0 : i32
    %c0_i32_1 = arith.constant 0 : i32
    return %c0_i32, %c0_i32_0 : i32, i32
  }
  func.func @transform_4(%arg0: i32) -> (i32, i32) {
    %c0_i32 = arith.constant 0 : i32
    %c0_i32_0 = arith.constant 0 : i32
    %c0_i32_1 = arith.constant 0 : i32
    return %c0_i32, %c0_i32_0 : i32, i32
  }
  func.func @transform_5(%arg0: i32) -> (i32, i32) {
    %c0_i32 = arith.constant 0 : i32
    %c0_i32_0 = arith.constant 0 : i32
    return %arg0, %c0_i32 : i32, i32
  }
  func.func @transform_6(%arg0: i32) -> (i32, i32) {
    %c0_i32 = arith.constant 0 : i32
    %c0_i32_0 = arith.constant 0 : i32
    return %arg0, %c0_i32 : i32, i32
  }
}

</mosaic_0001>

<llo_original>
// kernel: tpu_custom_call.1
$region0: #{tpu_custom_call.1}
  #allocation0 [shape = 'u32[]', space=smem, size = 0x4, offset = 0x4, fixed_abs, tag = 'smem constant byte address 0x4 - core index']
  #allocation1 [shape = 'u32[72,128]{1,0:T(1,128)}', space=vmem, size = 0x9000, scoped, tag = 'internal scratch']
  %s0 = inlined_call_operand.hbm [shape: f32[8,128], index: 0, kind: input, shape index: {}]
  %s1 = inlined_call_operand.hbm [shape: f32[8,128], index: 1, kind: input, shape index: {}]
  %s2 = inlined_call_operand.hbm [shape: f32[256,128], index: 2, kind: input, shape index: {}]
  %s3 = inlined_call_operand.hbm [shape: f32[128,640], index: 3, kind: input, shape index: {}]
  %s4 = inlined_call_operand.hbm [shape: f32[8,256], index: 4, kind: input, shape index: {}]
  %s5 = inlined_call_operand.hbm [shape: f32[8,128], index: 5, kind: output, shape index: {0}]
  %s6 = inlined_call_operand.hbm [shape: f32[8,256], index: 6, kind: output, shape index: {1}]
  %7 = xla_tuple %s5, %s6
  %s8 = sld [smem:[#allocation0]]
  $region58: #{tpu_custom_call.1} parent=0
    _
  %s10 = ssub.s32 1, %s8
  %s11 = scalar_select 0, %s10, %s8
  $region1: #{tpu_custom_call.1} parent=0
    #allocation2 [shape = 'u8[4096]{0}', space=vmem, size = 0x1000, scoped, tag = 'input window, operand 0, single buffered']
    #allocation3 [shape = 's32[1]{0}', space=sflag, size = 0x4, scoped, tag = 'scoped memory for tpu_custom_call.1']
    #allocation4 [shape = 's32[1]{0}', space=sflag, size = 0x4, scoped, tag = 'scoped memory for tpu_custom_call.1']
    #allocation5 [shape = 'u8[4096]{0}', space=vmem, size = 0x1000, scoped, tag = 'input window, operand 1, single buffered']
    #allocation6 [shape = 's32[1]{0}', space=sflag, size = 0x4, scoped, tag = 'scoped memory for tpu_custom_call.1']
    #allocation7 [shape = 'u8[131072]{0}', space=vmem, size = 0x20000, scoped, tag = 'input window, operand 2, single buffered']
    #allocation8 [shape = 'u8[327680]{0}', space=vmem, size = 0x50000, scoped, tag = 'input window, operand 3, single buffered']
    #allocation9 [shape = 's32[1]{0}', space=sflag, size = 0x4, scoped, tag = 'scoped memory for tpu_custom_call.1']
    #allocation10 [shape = 'u8[8192]{0}', space=vmem, size = 0x2000, scoped, tag = 'input window, operand 4, single buffered']
    #allocation11 [shape = 'u8[4096]{0}', space=vmem, size = 0x1000, scoped, tag = 'output window, operand 0, single buffered']
    #allocation12 [shape = 'u8[8192]{0}', space=vmem, size = 0x2000, scoped, tag = 'output window, operand 1, single buffered']
    #allocation13 [shape = 's32[1]{0}', space=sflag, size = 0x4, scoped, tag = 'scoped memory for tpu_custom_call.1']
    %12 = vsyncpa [#allocation3], 0
    %13 = vsyncpa [#allocation6], 0
    %14 = vsyncpa [#allocation9], 0
    %15 = vsyncpa [#allocation4], 0
    %16 = vsyncpa [#allocation13], 0
    // Predicated region
    $region2: #{tpu_custom_call.1} parent=1 // pred_check
      _
    $region3: #{tpu_custom_call.1} parent=1 // pred_check_branch
      %18 = sbr.rel (0) target = $region5
    $region4: #{tpu_custom_call.1} parent=1 // pred_region
      %20 = vsyncadd [#allocation3], 0
      %s22 = sshll.u32 %s0, 4
      %s23 = int_to_ptr.hbm [resolvable:$true] %s22
      %s24 = sshll.u32 [#allocation2], 4
      %s25 = int_to_ptr.vmem [resolvable:$true] %s24
      %27 = dma.hbm_to_vmem [thread:$0]  %s23, 128, %s25, [#allocation3]
    $region5: #{tpu_custom_call.1} parent=1 // pred_fallthru
      _
    // Predicated region
    $region6: #{tpu_custom_call.1} parent=1 // pred_check
      _
    $region7: #{tpu_custom_call.1} parent=1 // pred_check_branch
      %29 = sbr.rel (0) target = $region9
    $region8: #{tpu_custom_call.1} parent=1 // pred_region
      %31 = vsyncadd [#allocation6], 0
      %s33 = sshll.u32 %s1, 4
      %s34 = int_to_ptr.hbm [resolvable:$true] %s33
      %s35 = sshll.u32 [#allocation5], 4
      %s36 = int_to_ptr.vmem [resolvable:$true] %s35
      %38 = dma.hbm_to_vmem [thread:$0]  %s34, 128, %s36, [#allocation6]
    $region9: #{tpu_custom_call.1} parent=1 // pred_fallthru
      _
    // Predicated region
    $region10: #{tpu_custom_call.1} parent=1 // pred_check
      _
    $region11: #{tpu_custom_call.1} parent=1 // pred_check_branch
      %40 = sbr.rel (0) target = $region13
    $region12: #{tpu_custom_call.1} parent=1 // pred_region
      %42 = vsyncadd [#allocation6], 0
      %s43 = sshll.u32 %s2, 4
      %s44 = int_to_ptr.hbm [resolvable:$true] %s43
      %s45 = sshll.u32 [#allocation7], 4
      %s46 = int_to_ptr.vmem [resolvable:$true] %s45
      %51 = dma.hbm_to_vmem [thread:$0]  %s44, 4096, %s46, [#allocation6], 128, 128, 8
    $region13: #{tpu_custom_call.1} parent=1 // pred_fallthru
      _
    // Predicated region
    $region14: #{tpu_custom_call.1} parent=1 // pred_check
      _
    $region15: #{tpu_custom_call.1} parent=1 // pred_check_branch
      %53 = sbr.rel (0) target = $region17
    $region16: #{tpu_custom_call.1} parent=1 // pred_region
      %55 = vsyncadd [#allocation9], 0
      %s56 = sshll.u32 %s3, 4
      %s57 = int_to_ptr.hbm [resolvable:$true] %s56
      %s58 = sshll.u32 [#allocation8], 4
      %s59 = int_to_ptr.vmem [resolvable:$true] %s58
      %64 = dma.hbm_to_vmem [thread:$0]  %s57, 10240, %s59, [#allocation9], 640, 640, 40
    $region17: #{tpu_custom_call.1} parent=1 // pred_fallthru
      _
    // Predicated region
    $region18: #{tpu_custom_call.1} parent=1 // pred_check
      _
    $region19: #{tpu_custom_call.1} parent=1 // pred_check_branch
      %66 = sbr.rel (0) target = $region21
    $region20: #{tpu_custom_call.1} parent=1 // pred_region
      %68 = vsyncadd [#allocation9], 0
      %s70 = sshll.u32 %s4, 4
      %s71 = int_to_ptr.hbm [resolvable:$true] %s70
      %s72 = sshll.u32 [#allocation10], 4
      %s73 = int_to_ptr.vmem [resolvable:$true] %s72
      %75 = dma.hbm_to_vmem [thread:$0]  %s71, 256, %s73, [#allocation9]
    $region21: #{tpu_custom_call.1} parent=1 // pred_fallthru
      _
    // Predicated region
    $region22: #{tpu_custom_call.1} parent=1 // pred_check
      _
    $region23: #{tpu_custom_call.1} parent=1 // pred_check_branch
      %77 = sbr.rel (0) target = $region25
    $region24: #{tpu_custom_call.1} parent=1 // pred_region
      %79 = dma.done [#allocation3], 128
    $region25: #{tpu_custom_call.1} parent=1 // pred_fallthru
      _
    // Predicated region
    $region26: #{tpu_custom_call.1} parent=1 // pred_check
      _
    $region27: #{tpu_custom_call.1} parent=1 // pred_check_branch
      %81 = sbr.rel (0) target = $region29
    $region28: #{tpu_custom_call.1} parent=1 // pred_region
      %83 = dma.done [#allocation6], 128
    $region29: #{tpu_custom_call.1} parent=1 // pred_fallthru
      _
    // Predicated region
    $region30: #{tpu_custom_call.1} parent=1 // pred_check
      _
    $region31: #{tpu_custom_call.1} parent=1 // pred_check_branch
      %85 = sbr.rel (0) target = $region33
    $region32: #{tpu_custom_call.1} parent=1 // pred_region
      %87 = dma.done [#allocation6], 4096
    $region33: #{tpu_custom_call.1} parent=1 // pred_fallthru
      _
    // Predicated region
    $region34: #{tpu_custom_call.1} parent=1 // pred_check
      _
    $region35: #{tpu_custom_call.1} parent=1 // pred_check_branch
      %89 = sbr.rel (0) target = $region37
    $region36: #{tpu_custom_call.1} parent=1 // pred_region
      %91 = dma.done [#allocation9], 10240
    $region37: #{tpu_custom_call.1} parent=1 // pred_fallthru
      _
    // Predicated region
    $region38: #{tpu_custom_call.1} parent=1 // pred_check
      _
    $region39: #{tpu_custom_call.1} parent=1 // pred_check_branch
      %93 = sbr.rel (0) target = $region41
    $region40: #{tpu_custom_call.1} parent=1 // pred_region
      %95 = dma.done [#allocation9], 256
    $region41: #{tpu_custom_call.1} parent=1 // pred_fallthru
      _
    %v96 = vld [vmem:[#allocation2] sm:$0xff]
    %v97 = vld [vmem:[#allocation5] sm:$0xff]
    %v98 = vld [vmem:[#allocation7] sm:$0xff]
    %v99 = vld [vmem:[#allocation7 + $0x8] sm:$0xff]
    %v100 = vld [vmem:[#allocation7 + $0x10] sm:$0xff]
    %v101 = vld [vmem:[#allocation7 + $0x18] sm:$0xff]
    %v102 = vld [vmem:[#allocation7 + $0x20] sm:$0xff]
    %v103 = vld [vmem:[#allocation7 + $0x28] sm:$0xff]
    %v104 = vld [vmem:[#allocation7 + $0x30] sm:$0xff]
    %v105 = vld [vmem:[#allocation7 + $0x38] sm:$0xff]
    %v106 = vld [vmem:[#allocation7 + $0x40] sm:$0xff]
    %v107 = vld [vmem:[#allocation7 + $0x48] sm:$0xff]
    %v108 = vld [vmem:[#allocation7 + $0x50] sm:$0xff]
    %v109 = vld [vmem:[#allocation7 + $0x58] sm:$0xff]
    %v110 = vld [vmem:[#allocation7 + $0x60] sm:$0xff]
    %v111 = vld [vmem:[#allocation7 + $0x68] sm:$0xff]
    %v112 = vld [vmem:[#allocation7 + $0x70] sm:$0xff]
    %v113 = vld [vmem:[#allocation7 + $0x78] sm:$0xff]
    %v114 = vld [vmem:[#allocation7 + $0x80] sm:$0xff]
    %v115 = vld [vmem:[#allocation7 + $0x88] sm:$0xff]
    %v116 = vld [vmem:[#allocation7 + $0x90] sm:$0xff]
    %v117 = vld [vmem:[#allocation7 + $0x98] sm:$0xff]
    %v118 = vld [vmem:[#allocation7 + $0xa0] sm:$0xff]
    %v119 = vld [vmem:[#allocation7 + $0xa8] sm:$0xff]
    %v120 = vld [vmem:[#allocation7 + $0xb0] sm:$0xff]
    %v121 = vld [vmem:[#allocation7 + $0xb8] sm:$0xff]
    %v122 = vld [vmem:[#allocation7 + $0xc0] sm:$0xff]
    %v123 = vld [vmem:[#allocation7 + $0xc8] sm:$0xff]
    %v124 = vld [vmem:[#allocation7 + $0xd0] sm:$0xff]
    %v125 = vld [vmem:[#allocation7 + $0xd8] sm:$0xff]
    %v126 = vld [vmem:[#allocation7 + $0xe0] sm:$0xff]
    %v127 = vld [vmem:[#allocation7 + $0xe8] sm:$0xff]
    %v128 = vld [vmem:[#allocation7 + $0xf0] sm:$0xff]
    %v129 = vld [vmem:[#allocation7 + $0xf8] sm:$0xff]
    %v130 = vld [vmem:[#allocation8] sm:$0xff]
    %v131 = vld [vmem:[#allocation8 + $0x28] sm:$0xff]
    %v132 = vld [vmem:[#allocation8 + $0x50] sm:$0xff]
    %v133 = vld [vmem:[#allocation8 + $0x78] sm:$0xff]
    %v134 = vld [vmem:[#allocation8 + $0xa0] sm:$0xff]
    %v135 = vld [vmem:[#allocation8 + $0xc8] sm:$0xff]
    %v136 = vld [vmem:[#allocation8 + $0xf0] sm:$0xff]
    %v137 = vld [vmem:[#allocation8 + $0x118] sm:$0xff]
    %v138 = vld [vmem:[#allocation8 + $0x140] sm:$0xff]
    %v139 = vld [vmem:[#allocation8 + $0x168] sm:$0xff]
    %v140 = vld [vmem:[#allocation8 + $0x190] sm:$0xff]
    %v141 = vld [vmem:[#allocation8 + $0x1b8] sm:$0xff]
    %v142 = vld [vmem:[#allocation8 + $0x1e0] sm:$0xff]
    %v143 = vld [vmem:[#allocation8 + $0x208] sm:$0xff]
    %v144 = vld [vmem:[#allocation8 + $0x230] sm:$0xff]
    %v145 = vld [vmem:[#allocation8 + $0x258] sm:$0xff]
    %v146 = vld [vmem:[#allocation8 + $0x8] sm:$0xff]
    %v147 = vld [vmem:[#allocation8 + $0x10] sm:$0xff]
    %v148 = vld [vmem:[#allocation8 + $0x30] sm:$0xff]
    %v149 = vld [vmem:[#allocation8 + $0x38] sm:$0xff]
    %v150 = vld [vmem:[#allocation8 + $0x58] sm:$0xff]
    %v151 = vld [vmem:[#allocation8 + $0x60] sm:$0xff]
    %v152 = vld [vmem:[#allocation8 + $0x80] sm:$0xff]
    %v153 = vld [vmem:[#allocation8 + $0x88] sm:$0xff]
    %v154 = vld [vmem:[#allocation8 + $0xa8] sm:$0xff]
    %v155 = vld [vmem:[#allocation8 + $0xb0] sm:$0xff]
    %v156 = vld [vmem:[#allocation8 + $0xd0] sm:$0xff]
    %v157 = vld [vmem:[#allocation8 + $0xd8] sm:$0xff]
    %v158 = vld [vmem:[#allocation8 + $0xf8] sm:$0xff]
    %v159 = vld [vmem:[#allocation8 + $0x100] sm:$0xff]
    %v160 = vld [vmem:[#allocation8 + $0x120] sm:$0xff]
    %v161 = vld [vmem:[#allocation8 + $0x128] sm:$0xff]
    %v162 = vld [vmem:[#allocation8 + $0x148] sm:$0xff]
    %v163 = vld [vmem:[#allocation8 + $0x150] sm:$0xff]
    %v164 = vld [vmem:[#allocation8 + $0x170] sm:$0xff]
    %v165 = vld [vmem:[#allocation8 + $0x178] sm:$0xff]
    %v166 = vld [vmem:[#allocation8 + $0x198] sm:$0xff]
    %v167 = vld [vmem:[#allocation8 + $0x1a0] sm:$0xff]
    %v168 = vld [vmem:[#allocation8 + $0x1c0] sm:$0xff]
    %v169 = vld [vmem:[#allocation8 + $0x1c8] sm:$0xff]
    %v170 = vld [vmem:[#allocation8 + $0x1e8] sm:$0xff]
    %v171 = vld [vmem:[#allocation8 + $0x1f0] sm:$0xff]
    %v172 = vld [vmem:[#allocation8 + $0x210] sm:$0xff]
    %v173 = vld [vmem:[#allocation8 + $0x218] sm:$0xff]
    %v174 = vld [vmem:[#allocation8 + $0x238] sm:$0xff]
    %v175 = vld [vmem:[#allocation8 + $0x240] sm:$0xff]
    %v176 = vld [vmem:[#allocation8 + $0x260] sm:$0xff]
    %v177 = vld [vmem:[#allocation8 + $0x268] sm:$0xff]
    %v178 = vld [vmem:[#allocation8 + $0x18] sm:$0xff]
    %v179 = vld [vmem:[#allocation8 + $0x40] sm:$0xff]
    %v180 = vld [vmem:[#allocation8 + $0x68] sm:$0xff]
    %v181 = vld [vmem:[#allocation8 + $0x90] sm:$0xff]
    %v182 = vld [vmem:[#allocation8 + $0xb8] sm:$0xff]
    %v183 = vld [vmem:[#allocation8 + $0xe0] sm:$0xff]
    %v184 = vld [vmem:[#allocation8 + $0x108] sm:$0xff]
    %v185 = vld [vmem:[#allocation8 + $0x130] sm:$0xff]
    %v186 = vld [vmem:[#allocation8 + $0x158] sm:$0xff]
    %v187 = vld [vmem:[#allocation8 + $0x180] sm:$0xff]
    %v188 = vld [vmem:[#allocation8 + $0x1a8] sm:$0xff]
    %v189 = vld [vmem:[#allocation8 + $0x1d0] sm:$0xff]
    %v190 = vld [vmem:[#allocation8 + $0x1f8] sm:$0xff]
    %v191 = vld [vmem:[#allocation8 + $0x220] sm:$0xff]
    %v192 = vld [vmem:[#allocation8 + $0x248] sm:$0xff]
    %v193 = vld [vmem:[#allocation8 + $0x270] sm:$0xff]
    %v194 = vld [vmem:[#allocation8 + $0x20] sm:$0xff]
    %v195 = vld [vmem:[#allocation8 + $0x48] sm:$0xff]
    %v196 = vld [vmem:[#allocation8 + $0x70] sm:$0xff]
    %v197 = vld [vmem:[#allocation8 + $0x98] sm:$0xff]
    %v198 = vld [vmem:[#allocation8 + $0xc0] sm:$0xff]
    %v199 = vld [vmem:[#allocation8 + $0xe8] sm:$0xff]
    %v200 = vld [vmem:[#allocation8 + $0x110] sm:$0xff]
    %v201 = vld [vmem:[#allocation8 + $0x138] sm:$0xff]
    %v202 = vld [vmem:[#allocation8 + $0x160] sm:$0xff]
    %v203 = vld [vmem:[#allocation8 + $0x188] sm:$0xff]
    %v204 = vld [vmem:[#allocation8 + $0x1b0] sm:$0xff]
    %v205 = vld [vmem:[#allocation8 + $0x1d8] sm:$0xff]
    %v206 = vld [vmem:[#allocation8 + $0x200] sm:$0xff]
    %v207 = vld [vmem:[#allocation8 + $0x228] sm:$0xff]
    %v208 = vld [vmem:[#allocation8 + $0x250] sm:$0xff]
    %v209 = vld [vmem:[#allocation8 + $0x278] sm:$0xff]
    %v210 = vld [vmem:[#allocation10] ss:$0 sm:$0xff]
    %v211 = vld [vmem:[#allocation10 + $0x1] ss:$0 sm:$0xff]
    %s212 = scalar_lea.vmem [#allocation10], 2
    %v213 = vld [vmem:[%s212] ss:$8 sm:$0x3]
    %v214 = vld [vmem:[#allocation10 + $0x3] ss:$0 sm:$0xff]
    %v215 = vld [vmem:[#allocation10 + $0x4] ss:$0 sm:$0xff]
    %v216 = vld [vmem:[#allocation10 + $0x5] ss:$0 sm:$0xff]
    %217 = vmatpush.msra.mxu0 %v113
    %218 = vmatpush.msra.mxu0 %v112
    %219 = vmatpush.msra.mxu0 %v111
    %220 = vmatpush.msra.mxu0 %v110
    %221 = vmatpush.msra.mxu0 %v109
    %222 = vmatpush.msra.mxu0 %v108
    %223 = vmatpush.msra.mxu0 %v107
    %224 = vmatpush.msra.mxu0 %v106
    %225 = vmatpush.msra.mxu0 %v105
    %226 = vmatpush.msra.mxu0 %v104
    %227 = vmatpush.msra.mxu0 %v103
    %228 = vmatpush.msra.mxu0 %v102
    %229 = vmatpush.msra.mxu0 %v101
    %230 = vmatpush.msra.mxu0 %v100
    %231 = vmatpush.msra.mxu0 %v99
    %232 = vmatpush.msra.mxu0 %v98
    %233 = vmatmul.f32.gmra.mxu0 %v96
    %v234 = vpop.f32.mrf.mxu0
    %v235 = vadd.f32 %v210, %v234
    %236 = vdwg.mxu0
    %v237 = vmax.f32 %v235, 0.0
    %238 = vmatpush.msra.mxu0 %v145
    %239 = vmatpush.msra.mxu0 %v144
    %240 = vmatpush.msra.mxu0 %v143
    %241 = vmatpush.msra.mxu0 %v142
    %242 = vmatpush.msra.mxu0 %v141
    %243 = vmatpush.msra.mxu0 %v140
    %244 = vmatpush.msra.mxu0 %v139
    %245 = vmatpush.msra.mxu0 %v138
    %246 = vmatpush.msra.mxu0 %v137
    %247 = vmatpush.msra.mxu0 %v136
    %248 = vmatpush.msra.mxu0 %v135
    %249 = vmatpush.msra.mxu0 %v134
    %250 = vmatpush.msra.mxu0 %v133
    %251 = vmatpush.msra.mxu0 %v132
    %252 = vmatpush.msra.mxu0 %v131
    %253 = vmatpush.msra.mxu0 %v130
    %254 = vmatmul.f32.gmra.mxu0 %v237
    %v255 = vpop.f32.mrf.mxu0
    %v256 = vadd.f32 %v211, %v255
    %257 = vdwg.mxu0
    %v258 = vmax.f32 %v256, 0.0
    %v260 = vperm.slane %v213, 0
    %v261 = vperm.slane %v213, 1
    %264 = vmatpush.msra.mxu0 %v176
    %265 = vmatpush.msra.mxu0 %v174
    %266 = vmatpush.msra.mxu0 %v172
    %267 = vmatpush.msra.mxu0 %v170
    %268 = vmatpush.msra.mxu0 %v168
    %269 = vmatpush.msra.mxu0 %v166
    %270 = vmatpush.msra.mxu0 %v164
    %271 = vmatpush.msra.mxu0 %v162
    %272 = vmatpush.msra.mxu0 %v160
    %273 = vmatpush.msra.mxu0 %v158
    %274 = vmatpush.msra.mxu0 %v156
    %275 = vmatpush.msra.mxu0 %v154
    %276 = vmatpush.msra.mxu0 %v152
    %277 = vmatpush.msra.mxu0 %v150
    %278 = vmatpush.msra.mxu0 %v148
    %279 = vmatpush.msra.mxu0 %v146
    %280 = vmatmul.f32.gmra.mxu0 %v258
    %v281 = vpop.f32.mrf.mxu0
    %v282 = vadd.f32 %v260, %v281
    %283 = vdwg.mxu0
    %284 = vmatpush.msra.mxu0 %v177
    %285 = vmatpush.msra.mxu0 %v175
    %286 = vmatpush.msra.mxu0 %v173
    %287 = vmatpush.msra.mxu0 %v171
    %288 = vmatpush.msra.mxu0 %v169
    %289 = vmatpush.msra.mxu0 %v167
    %290 = vmatpush.msra.mxu0 %v165
    %291 = vmatpush.msra.mxu0 %v163
    %292 = vmatpush.msra.mxu0 %v161
    %293 = vmatpush.msra.mxu0 %v159
    %294 = vmatpush.msra.mxu0 %v157
    %295 = vmatpush.msra.mxu0 %v155
    %296 = vmatpush.msra.mxu0 %v153
    %297 = vmatpush.msra.mxu0 %v151
    %298 = vmatpush.msra.mxu0 %v149
    %299 = vmatpush.msra.mxu0 %v147
    %300 = vmatmul.f32.gmra.mxu0 %v258
    %v301 = vpop.f32.mrf.mxu0
    %v302 = vadd.f32 %v261, %v301
    %303 = vdwg.mxu0
    %v304 = vmul.f32 %v302, 0.5
    %v305 = vmul.f32 %v304, 1.442695
    %v306 = vpow.pop %v305
    %v307 = vmul.f32 %v306, %v97
    %v308 = vadd.f32 %v282, %v307
    %309 = vmatpush.msra.mxu0 %v129
    %310 = vmatpush.msra.mxu0 %v128
    %311 = vmatpush.msra.mxu0 %v127
    %312 = vmatpush.msra.mxu0 %v126
    %313 = vmatpush.msra.mxu0 %v125
    %314 = vmatpush.msra.mxu0 %v124
    %315 = vmatpush.msra.mxu0 %v123
    %316 = vmatpush.msra.mxu0 %v122
    %317 = vmatpush.msra.mxu0 %v121
    %318 = vmatpush.msra.mxu0 %v120
    %319 = vmatpush.msra.mxu0 %v119
    %320 = vmatpush.msra.mxu0 %v118
    %321 = vmatpush.msra.mxu0 %v117
    %322 = vmatpush.msra.mxu0 %v116
    %323 = vmatpush.msra.mxu0 %v115
    %324 = vmatpush.msra.mxu0 %v114
    %325 = vmatmul.f32.gmra.mxu0 %v308
    %v326 = vpop.f32.mrf.mxu0
    %v327 = vadd.f32 %v214, %v326
    %328 = vdwg.mxu0
    %v329 = vmax.f32 %v327, 0.0
    %330 = vmatpush.msra.mxu0 %v193
    %331 = vmatpush.msra.mxu0 %v192
    %332 = vmatpush.msra.mxu0 %v191
    %333 = vmatpush.msra.mxu0 %v190
    %334 = vmatpush.msra.mxu0 %v189
    %335 = vmatpush.msra.mxu0 %v188
    %336 = vmatpush.msra.mxu0 %v187
    %337 = vmatpush.msra.mxu0 %v186
    %338 = vmatpush.msra.mxu0 %v185
    %339 = vmatpush.msra.mxu0 %v184
    %340 = vmatpush.msra.mxu0 %v183
    %341 = vmatpush.msra.mxu0 %v182
    %342 = vmatpush.msra.mxu0 %v181
    %343 = vmatpush.msra.mxu0 %v180
    %344 = vmatpush.msra.mxu0 %v179
    %345 = vmatpush.msra.mxu0 %v178
    %346 = vmatmul.f32.gmra.mxu0 %v329
    %v347 = vpop.f32.mrf.mxu0
    %v348 = vadd.f32 %v215, %v347
    %349 = vdwg.mxu0
    %v350 = vmax.f32 %v348, 0.0
    %351 = vmatpush.msra.mxu0 %v209
    %352 = vmatpush.msra.mxu0 %v208
    %353 = vmatpush.msra.mxu0 %v207
    %354 = vmatpush.msra.mxu0 %v206
    %355 = vmatpush.msra.mxu0 %v205
    %356 = vmatpush.msra.mxu0 %v204
    %357 = vmatpush.msra.mxu0 %v203
    %358 = vmatpush.msra.mxu0 %v202
    %359 = vmatpush.msra.mxu0 %v201
    %360 = vmatpush.msra.mxu0 %v200
    %361 = vmatpush.msra.mxu0 %v199
    %362 = vmatpush.msra.mxu0 %v198
    %363 = vmatpush.msra.mxu0 %v197
    %364 = vmatpush.msra.mxu0 %v196
    %365 = vmatpush.msra.mxu0 %v195
    %366 = vmatpush.msra.mxu0 %v194
    %367 = vmatmul.f32.gmra.mxu0 %v350
    %v368 = vpop.f32.mrf.mxu0
    %v369 = vadd.f32 %v216, %v368
    %370 = vdwg.mxu0
    %371 = vst [vmem:[#allocation11] sm:$0xff] %v369
    %372 = vst [vmem:[#allocation12] sm:$0xff] %v282
    %373 = vst [vmem:[#allocation12 + $0x8] sm:$0xff] %v302
    // Predicated region
    $region42: #{tpu_custom_call.1} parent=1 // pred_check
      _
    $region43: #{tpu_custom_call.1} parent=1 // pred_check_branch
      %375 = sbr.rel (0) target = $region45
    $region44: #{tpu_custom_call.1} parent=1 // pred_region
      %377 = vsyncadd [#allocation4], 0
      %s379 = sshll.u32 [#allocation11], 4
      %s380 = int_to_ptr.vmem [resolvable:$true] %s379
      %s381 = sshll.u32 %s5, 4
      %s382 = int_to_ptr.hbm [resolvable:$true] %s381
      %384 = dma.vmem_to_hbm [thread:$0]  %s380, 128, %s382, [#allocation4]
    $region45: #{tpu_custom_call.1} parent=1 // pred_fallthru
      _
    // Predicated region
    $region46: #{tpu_custom_call.1} parent=1 // pred_check
      _
    $region47: #{tpu_custom_call.1} parent=1 // pred_check_branch
      %386 = sbr.rel (0) target = $region49
    $region48: #{tpu_custom_call.1} parent=1 // pred_region
      %388 = vsyncadd [#allocation13], 0
      %s390 = sshll.u32 [#allocation12], 4
      %s391 = int_to_ptr.vmem [resolvable:$true] %s390
      %s392 = sshll.u32 %s6, 4
      %s393 = int_to_ptr.hbm [resolvable:$true] %s392
      %395 = dma.vmem_to_hbm [thread:$0]  %s391, 256, %s393, [#allocation13]
    $region49: #{tpu_custom_call.1} parent=1 // pred_fallthru
      _
    // Predicated region
    $region50: #{tpu_custom_call.1} parent=1 // pred_check
      _
    $region51: #{tpu_custom_call.1} parent=1 // pred_check_branch
      %397 = sbr.rel (0) target = $region53
    $region52: #{tpu_custom_call.1} parent=1 // pred_region
      %399 = dma.done [#allocation4], 128
    $region53: #{tpu_custom_call.1} parent=1 // pred_fallthru
      _
    // Predicated region
    $region54: #{tpu_custom_call.1} parent=1 // pred_check
      _
    $region55: #{tpu_custom_call.1} parent=1 // pred_check_branch
      %401 = sbr.rel (0) target = $region57
    $region56: #{tpu_custom_call.1} parent=1 // pred_region
      %403 = dma.done [#allocation13], 256
    $region57: #{tpu_custom_call.1} parent=1 // pred_fallthru
      _
    %404 = vsyncpa [#allocation3], 1
    %405 = vsyncpa [#allocation6], 1
    %406 = vsyncpa [#allocation9], 1
    %407 = vsyncpa [#allocation4], 1
    %408 = vsyncpa [#allocation13], 1

</llo_original>
